<compile_context>
chip_gen: v5e
topology: v5e:2x2
jax: 0.10.0
libtpu: 0.0.40
codegen_flags: <defaults>
</compile_context>

<pallas_src>
import numpy as np
import jax
import jax.numpy as jnp
from jax.experimental import pallas as pl
from jax.experimental.pallas import tpu as pltpu


def build_pairwise_sqrt_dists(n_patches: int) -> np.ndarray:
    """Euclidean distances between patch-grid coordinates, cls-token row/col of zeros
    prepended -> (n_patches+1, n_patches+1) float32. Host-side, computed once.

    # TODO(synk): the reference module stores the raw (N,N,2) coordinate diffs and
    # elementwise-sqrts them (NaN for negative diffs); per the `norm=2` intent we store
    # ||p_i - p_j||_2 directly so sqrt(dists) is the Euclidean distance.
    """
    n_rows = n_cols = int(np.sqrt(n_patches))
    rows, cols = np.indices((n_rows, n_cols))
    idxs = np.stack([rows.flatten(), cols.flatten()], axis=-1).astype(np.float32)
    diff = idxs[:, None, :] - idxs[None, :, :]            # (n, n, 2)
    d2 = np.sum(diff * diff, axis=-1)                     # (n, n)
    d2 = np.pad(d2, ((1, 0), (1, 0)), mode="constant")    # (n+1, n+1): cls token
    return np.sqrt(d2).astype(np.float32)


def _num_tensorcores() -> int:
    """TensorCores per chip (2 on v7x, 1 on v5e/v6e); conservative default 1."""
    try:
        info = pltpu.get_tpu_info()
        for attr in ("num_tensorcores", "tensorcore_count", "num_cores", "core_count"):
            v = getattr(info, attr, None)
            if isinstance(v, int) and v > 0:
                return v
    except Exception:
        pass
    try:
        kind = jax.devices()[0].device_kind.lower()
        if "v7" in kind or "7x" in kind:
            return 2
    except Exception:
        pass
    return 1


def _choose_bh_block(BH, N, HD, q_itemsize, mask_itemsize, n_tc,
                     vmem_budget_bytes=12 << 20):
    """Largest BH tile whose double-buffered working set fits the VMEM budget while
    giving every TensorCore a grid step. Tiles must divide BH and be a multiple of 8
    (sublane-legal for the 2-D sigma block) unless the tile is the whole array."""
    per_row = 2 * (N * HD * q_itemsize + N * N * mask_itemsize + N * 4)  # x2 buffers
    budget_blk = max(1, vmem_budget_bytes // per_row)
    target = min(BH, budget_blk, -(-BH // max(1, n_tc)))
    for blk in range(int(target), 0, -1):
        if BH % blk == 0 and (blk == BH or blk % 8 == 0):
            return blk
    return BH  # fallback: single step (always layout-legal)


def _uniform_kernel_body(q_ref, sqrt_d_ref, w_ref, b_ref, mask_ref, sig_ref):
    q = q_ref[...].astype(jnp.float32)               # (bh_blk, N, HD), upcast in VMEM
    w = w_ref[...].astype(jnp.float32)               # (1, HD)
    b = b_ref[0]                                     # SMEM scalar

    # sigma_layer = Linear(HD, 1): VPU multiply + cross-lane reduce (tiny GEMV).
    sig = jnp.sum(q * w, axis=-1) + b                # (bh_blk, N), lane-dense
    sig_ref[...] = sig

    # Uniform-kernel support: sqrt(d)/sig^2 <= 1  <=>  sqrt(d) <= sig^2.
    # After the (always-0.5-diagonal) row-max normalization, probs is in {0, 1};
    # RelaxedBernoulli with probs in {0,1} returns probs exactly (logits = +-inf),
    # so the mask is deterministic and the PRNG chain is elided.
    sqrt_d = sqrt_d_ref[...]                                          # (N, N)
    keep = sqrt_d[None, :, :] <= (sig * sig)[:, :, None]              # (bh_blk, N, N)
    mask_ref[...] = jnp.where(keep, jnp.float32(1.0),
                              jnp.float32(0.0)).astype(mask_ref.dtype)


def uniform_kernel_forward(query, sigma_w, sigma_b, sqrt_dists, *,
                           temperature=0.1, mask_dtype=jnp.bfloat16):
    """mask, sigmas = UniformKernel.forward(query).

    `temperature` is accepted for API parity; probs is exactly {0,1} so the relaxed
    Bernoulli sample is independent of it. Mask is bf16 (values are exactly 0/1).
    """
    del temperature
    B, H, N, HD = query.shape
    BH = B * H

    q = query.reshape(BH, N, HD)                      # native dtype; upcast in kernel
    sqrt_d = sqrt_dists if sqrt_dists.dtype == jnp.float32 \
        else sqrt_dists.astype(jnp.float32)
    w_row = sigma_w.reshape(1, HD).astype(jnp.float32)
    b_vec = sigma_b.reshape(1).astype(jnp.float32)

    mask_isz = jnp.dtype(mask_dtype).itemsize
    q_isz = jnp.dtype(q.dtype).itemsize
    n_tc = _num_tensorcores()
    bh_blk = _choose_bh_block(BH, N, HD, q_isz, mask_isz, n_tc)
    grid = (BH // bh_blk,)

    per_step = (bh_blk * (N * HD * q_isz + N * N * mask_isz + N * 4)
                + N * N * 4 + HD * 4)
    vmem_limit = int(min(max(2 * per_step + (4 << 20), 16 << 20), 48 << 20))

    mask3, sig2 = pl.pallas_call(
        _uniform_kernel_body,
        out_shape=(jax.ShapeDtypeStruct((BH, N, N), mask_dtype),
                   jax.ShapeDtypeStruct((BH, N), jnp.float32)),
        grid=grid,
        in_specs=[
            pl.BlockSpec((bh_blk, N, HD), lambda i: (i, 0, 0)),     # query slab
            pl.BlockSpec((N, N), lambda i: (0, 0)),                 # sqrt(dists), resident
            pl.BlockSpec((1, HD), lambda i: (0, 0)),                # sigma weight
            pl.BlockSpec(memory_space=pltpu.MemorySpace.SMEM),      # sigma bias (scalar)
        ],
        out_specs=(
            pl.BlockSpec((bh_blk, N, N), lambda i: (i, 0, 0)),      # mask (no pad, no slice)
            pl.BlockSpec((bh_blk, N), lambda i: (i, 0)),            # sigmas (lane-dense 2-D)
        ),
        compiler_params=pltpu.CompilerParams(
            dimension_semantics=("parallel",),
            vmem_limit_bytes=vmem_limit),
    )(q, sqrt_d, w_row, b_vec)

    mask = mask3.reshape(B, H, N, N)        # contiguous reshape: free
    sigmas = sig2.reshape(B, H, N, 1)       # contiguous reshape: free
    return mask, sigmas


if __name__ == "__main__":
    key = jax.random.PRNGKey(0)
    B, H, HD = 2, 4, 32          # batch, num_attention_heads, attention_head_size
    n_patches = 16               # 4x4 patch grid
    N = n_patches + 1            # +1 cls token
    temperature = 0.1

    k_q, k_w, k_b = jax.random.split(key, 3)
    query = jax.random.normal(k_q, (B, H, N, HD), dtype=jnp.float32)
    sigma_w = jax.random.normal(k_w, (HD, 1), dtype=jnp.float32) / np.sqrt(HD)
    sigma_b = jax.random.normal(k_b, (1,), dtype=jnp.float32) * 0.01

    sqrt_dists = jnp.asarray(build_pairwise_sqrt_dists(n_patches))   # built once

    mask, sigmas = uniform_kernel_forward(
        query, sigma_w, sigma_b, sqrt_dists, temperature=temperature)
    jax.block_until_ready((mask, sigmas))

    assert mask.shape == (B, H, N, N), mask.shape
    assert sigmas.shape == (B, H, N, 1), sigmas.shape
    mask_f = mask.astype(jnp.float32)
    assert bool(jnp.all(jnp.isfinite(mask_f)))
    assert bool(jnp.all(jnp.isfinite(sigmas)))
    assert bool(jnp.all((mask_f == 0.0) | (mask_f == 1.0)))
    assert bool(jnp.all(mask_f[..., 0] == 1.0))   # cls column (distance 0) always kept

    # Pure-JAX reference check (ignore elements sitting exactly on the threshold).
    sig_ref = query.astype(jnp.float32) @ sigma_w.astype(jnp.float32) + sigma_b
    thresh = sig_ref ** 2                                          # (B,H,N,1)
    ref_keep = (jnp.asarray(sqrt_dists)[None, None] <= thresh).astype(jnp.float32)
    boundary = jnp.abs(jnp.asarray(sqrt_dists)[None, None] - thresh) < 1e-4
    assert bool(jnp.all((mask_f == ref_keep) | boundary))
    assert bool(jnp.allclose(sigmas, sig_ref, atol=1e-5))
    print("KERNEL_OK")
</pallas_src>

<mosaic_0001>
module attributes {stable_mosaic.version = 11 : i64} {
  func.func @_uniform_kernel_body(%arg0: i32, %arg1: memref<8x17x32xf32, #tpu.memory_space<vmem>>, %arg2: memref<17x17xf32, #tpu.memory_space<vmem>>, %arg3: memref<1x32xf32, #tpu.memory_space<vmem>>, %arg4: memref<1xf32, #tpu.memory_space<smem>>, %arg5: memref<8x17x17xbf16, #tpu.memory_space<vmem>>, %arg6: memref<8x17xf32, #tpu.memory_space<vmem>>) attributes {dimension_semantics = [#tpu.dimension_semantics<parallel>], iteration_bounds = array<i64: 1>, scalar_prefetch = 0 : i64, scratch_operands = 0 : i64, tpu.core_type = #tpu.core_type<tc>, window_params = [{transform_indices = @transform_0, window_bounds = array<i64: 8, 17, 32>}, {pipeline_mode = #tpu.pipeline_mode<synchronous>, transform_indices = @transform_1, window_bounds = array<i64: 17, 17>}, {pipeline_mode = #tpu.pipeline_mode<synchronous>, transform_indices = @transform_2, window_bounds = array<i64: 1, 32>}, {transform_indices = @transform_3, window_bounds = array<i64: 1>}, {transform_indices = @transform_4, window_bounds = array<i64: 8, 17, 17>}, {transform_indices = @transform_5, window_bounds = array<i64: 8, 17>}]} {
    %c0 = arith.constant 0 : index
    %c0_0 = arith.constant 0 : index
    %c0_1 = arith.constant 0 : index
    %0 = vector.load %arg1[%c0, %c0_0, %c0_1] : memref<8x17x32xf32, #tpu.memory_space<vmem>>, vector<8x17x32xf32>
    %c0_2 = arith.constant 0 : index
    %c0_3 = arith.constant 0 : index
    %1 = vector.load %arg3[%c0_2, %c0_3] : memref<1x32xf32, #tpu.memory_space<vmem>>, vector<1x32xf32>
    %c0_4 = arith.constant 0 : index
    %2 = memref.load %arg4[%c0_4] : memref<1xf32, #tpu.memory_space<smem>>
    %3 = vector.shape_cast %1 : vector<1x32xf32> to vector<1x1x32xf32>
    %4 = vector.broadcast %3 : vector<1x1x32xf32> to vector<8x17x32xf32>
    %5 = arith.mulf %0, %4 : vector<8x17x32xf32>
    %cst = arith.constant dense<0.000000e+00> : vector<8x17xf32>
    %6 = vector.multi_reduction <add>, %5, %cst [2] : vector<8x17x32xf32> to vector<8x17xf32>
    %7 = vector.broadcast %2 : f32 to vector<8x17xf32>
    %8 = arith.addf %6, %7 : vector<8x17xf32>
    %c0_5 = arith.constant 0 : index
    %c0_6 = arith.constant 0 : index
    %9 = vector.load %arg6[%c0_5, %c0_6] : memref<8x17xf32, #tpu.memory_space<vmem>>, vector<8x17xf32>
    tpu.vector_store %arg6[%c0_5, %c0_6], %8 {strides = array<i32>} : memref<8x17xf32, #tpu.memory_space<vmem>>, vector<8x17xf32>,
    %c0_7 = arith.constant 0 : index
    %c0_8 = arith.constant 0 : index
    %10 = vector.load %arg2[%c0_7, %c0_8] : memref<17x17xf32, #tpu.memory_space<vmem>>, vector<17x17xf32>
    %11 = vector.shape_cast %10 : vector<17x17xf32> to vector<1x17x17xf32>
    %12 = arith.mulf %8, %8 : vector<8x17xf32>
    %13 = vector.shape_cast %12 : vector<8x17xf32> to vector<8x17x1xf32>
    %14 = vector.broadcast %11 : vector<1x17x17xf32> to vector<8x17x17xf32>
    %15 = vector.broadcast %13 : vector<8x17x1xf32> to vector<8x17x17xf32>
    %16 = arith.cmpf ole, %14, %15 : vector<8x17x17xf32>
    %cst_9 = arith.constant 1.000000e+00 : f32
    %cst_10 = arith.constant 0.000000e+00 : f32
    %17 = vector.broadcast %cst_9 : f32 to vector<8x17x17xf32>
    %18 = vector.broadcast %cst_10 : f32 to vector<8x17x17xf32>
    %19 = arith.select %16, %17, %18 : vector<8x17x17xi1>, vector<8x17x17xf32>
    %20 = arith.truncf %19 : vector<8x17x17xf32> to vector<8x17x17xbf16>
    %c0_11 = arith.constant 0 : index
    %c0_12 = arith.constant 0 : index
    %c0_13 = arith.constant 0 : index
    %21 = vector.load %arg5[%c0_11, %c0_12, %c0_13] : memref<8x17x17xbf16, #tpu.memory_space<vmem>>, vector<8x17x17xbf16>
    tpu.vector_store %arg5[%c0_11, %c0_12, %c0_13], %20 {strides = array<i32>} : memref<8x17x17xbf16, #tpu.memory_space<vmem>>, vector<8x17x17xbf16>,
    return
  }
  func.func @transform_0(%arg0: i32) -> (i32, i32, i32) {
    %c0_i32 = arith.constant 0 : i32
    %c0_i32_0 = arith.constant 0 : i32
    %c0_i32_1 = arith.constant 0 : i32
    return %arg0, %c0_i32, %c0_i32_0 : i32, i32, i32
  }
  func.func @transform_1(%arg0: i32) -> (i32, i32) {
    %c0_i32 = arith.constant 0 : i32
    %c0_i32_0 = arith.constant 0 : i32
    %c0_i32_1 = arith.constant 0 : i32
    return %c0_i32, %c0_i32_0 : i32, i32
  }
  func.func @transform_2(%arg0: i32) -> (i32, i32) {
    %c0_i32 = arith.constant 0 : i32
    %c0_i32_0 = arith.constant 0 : i32
    %c0_i32_1 = arith.constant 0 : i32
    return %c0_i32, %c0_i32_0 : i32, i32
  }
  func.func @transform_3(%arg0: i32) -> i32 {
    %c0_i32 = arith.constant 0 : i32
    %c0_i32_0 = arith.constant 0 : i32
    return %c0_i32 : i32
  }
  func.func @transform_4(%arg0: i32) -> (i32, i32, i32) {
    %c0_i32 = arith.constant 0 : i32
    %c0_i32_0 = arith.constant 0 : i32
    %c0_i32_1 = arith.constant 0 : i32
    return %arg0, %c0_i32, %c0_i32_0 : i32, i32, i32
  }
  func.func @transform_5(%arg0: i32) -> (i32, i32) {
    %c0_i32 = arith.constant 0 : i32
    %c0_i32_0 = arith.constant 0 : i32
    return %arg0, %c0_i32 : i32, i32
  }
}

</mosaic_0001>

<llo_original>
// kernel: tpu_custom_call.1
$region0: #{tpu_custom_call.1}
  #allocation0 [shape = 'u32[]', space=smem, size = 0x4, offset = 0x4, fixed_abs, tag = 'smem constant byte address 0x4 - core index']
  #allocation1 [shape = 'u32[72,128]{1,0:T(1,128)}', space=vmem, size = 0x9000, scoped, tag = 'internal scratch']
  #allocation2 [shape = 'f32[1]{0:T(128)S(6)}', space=smem, size = 0x200, scoped, tag = 'scoped memory for tpu_custom_call.1']
  %s0 = inlined_call_operand.vmem [shape: f32[8,17,32], index: 0, kind: input, shape index: {}]
  %s1 = inlined_call_operand.vmem [shape: f32[17,17], index: 1, kind: input, shape index: {}]
  %s2 = inlined_call_operand.vmem [shape: f32[1,32], index: 2, kind: input, shape index: {}]
  %s3 = inlined_call_operand.<no memory space> [shape: f32[1], index: 3, kind: input, shape index: {}]
  %s4 = inlined_call_operand.vmem [shape: bf16[8,17,17], index: 4, kind: output, shape index: {0}]
  %s5 = inlined_call_operand.hbm [shape: f32[8,17], index: 5, kind: output, shape index: {1}]
  %6 = xla_tuple %s4, %s5
  %s7 = sld [smem:[#allocation0]]
  $region34: #{tpu_custom_call.1} parent=0
    _
  %s9 = ssub.s32 1, %s7
  %s10 = scalar_select 0, %s9, %s7
  %11 = sst [smem:[#allocation2]] %s3
  $region1: #{tpu_custom_call.1} parent=0
    #allocation3 [shape = 'u8[4096]{0}', space=vmem, size = 0x1000, scoped, tag = 'output window, operand 1, single buffered']
    #allocation4 [shape = 's32[1]{0}', space=sflag, size = 0x4, scoped, tag = 'scoped memory for tpu_custom_call.1']
    %12 = vsyncpa [#allocation4], 0
    // Predicated region
    $region2: #{tpu_custom_call.1} parent=1 // pred_check
      _
    $region3: #{tpu_custom_call.1} parent=1 // pred_check_branch
      %14 = sbr.rel (0) target = $region5
    $region4: #{tpu_custom_call.1} parent=1 // pred_region
      _
    $region5: #{tpu_custom_call.1} parent=1 // pred_fallthru
      _
    // Predicated region
    $region6: #{tpu_custom_call.1} parent=1 // pred_check
      _
    $region7: #{tpu_custom_call.1} parent=1 // pred_check_branch
      %16 = sbr.rel (0) target = $region9
    $region8: #{tpu_custom_call.1} parent=1 // pred_region
      _
    $region9: #{tpu_custom_call.1} parent=1 // pred_fallthru
      _
    // Predicated region
    $region10: #{tpu_custom_call.1} parent=1 // pred_check
      _
    $region11: #{tpu_custom_call.1} parent=1 // pred_check_branch
      %18 = sbr.rel (0) target = $region13
    $region12: #{tpu_custom_call.1} parent=1 // pred_region
      _
    $region13: #{tpu_custom_call.1} parent=1 // pred_fallthru
      _
    // Predicated region
    $region14: #{tpu_custom_call.1} parent=1 // pred_check
      _
    $region15: #{tpu_custom_call.1} parent=1 // pred_check_branch
      %20 = sbr.rel (0) target = $region17
    $region16: #{tpu_custom_call.1} parent=1 // pred_region
      _
    $region17: #{tpu_custom_call.1} parent=1 // pred_fallthru
      _
    %v21 = vld [vmem:[%s0] sm:$0xff]
    %v22 = vld [vmem:[%s0 + $0x8] sm:$0xff]
    %v23 = vld [vmem:[%s0 + $0x10] sm:$0x1]
    %v24 = vld [vmem:[%s0 + $0x18] sm:$0xff]
    %v25 = vld [vmem:[%s0 + $0x20] sm:$0xff]
    %v26 = vld [vmem:[%s0 + $0x28] sm:$0x1]
    %v27 = vld [vmem:[%s0 + $0x30] sm:$0xff]
    %v28 = vld [vmem:[%s0 + $0x38] sm:$0xff]
    %v29 = vld [vmem:[%s0 + $0x40] sm:$0x1]
    %v30 = vld [vmem:[%s0 + $0x48] sm:$0xff]
    %v31 = vld [vmem:[%s0 + $0x50] sm:$0xff]
    %v32 = vld [vmem:[%s0 + $0x58] sm:$0x1]
    %v33 = vld [vmem:[%s0 + $0x60] sm:$0xff]
    %v34 = vld [vmem:[%s0 + $0x68] sm:$0xff]
    %v35 = vld [vmem:[%s0 + $0x70] sm:$0x1]
    %v36 = vld [vmem:[%s0 + $0x78] sm:$0xff]
    %v37 = vld [vmem:[%s0 + $0x80] sm:$0xff]
    %v38 = vld [vmem:[%s0 + $0x88] sm:$0x1]
    %v39 = vld [vmem:[%s0 + $0x90] sm:$0xff]
    %v40 = vld [vmem:[%s0 + $0x98] sm:$0xff]
    %v41 = vld [vmem:[%s0 + $0xa0] sm:$0x1]
    %v42 = vld [vmem:[%s0 + $0xa8] sm:$0xff]
    %v43 = vld [vmem:[%s0 + $0xb0] sm:$0xff]
    %v44 = vld [vmem:[%s0 + $0xb8] sm:$0x1]
    %v45 = vld [vmem:[%s2] sm:$0x1]
    %s46 = sld [smem:[#allocation2]]
    %v48 = vperm.slane %v45, 0
    %v50 = vmul.f32 %v21, %v48
    %v51 = vmul.f32 %v22, %v48
    %v52 = vmul.f32 %v23, %v48
    %v53 = vmul.f32 %v24, %v48
    %v54 = vmul.f32 %v25, %v48
    %v55 = vmul.f32 %v26, %v48
    %v56 = vmul.f32 %v27, %v48
    %v57 = vmul.f32 %v28, %v48
    %v58 = vmul.f32 %v29, %v48
    %v59 = vmul.f32 %v30, %v48
    %v60 = vmul.f32 %v31, %v48
    %v61 = vmul.f32 %v32, %v48
    %v62 = vmul.f32 %v33, %v48
    %v63 = vmul.f32 %v34, %v48
    %v64 = vmul.f32 %v35, %v48
    %v65 = vmul.f32 %v36, %v48
    %v66 = vmul.f32 %v37, %v48
    %v67 = vmul.f32 %v38, %v48
    %v68 = vmul.f32 %v39, %v48
    %v69 = vmul.f32 %v40, %v48
    %v70 = vmul.f32 %v41, %v48
    %v71 = vmul.f32 %v42, %v48
    %v72 = vmul.f32 %v43, %v48
    %v73 = vmul.f32 %v44, %v48
    %vm74 = vcmask 261120
    %v75 = vsel %vm74, %v50, 0.0
    %76 = vadd.xlane.f32.xlu0 %v75
    %v77 = vpop.xlane.xlu0 %76
    %v78 = vsel %vm74, %v51, 0.0
    %79 = vadd.xlane.f32.xlu0 %v78
    %v80 = vpop.xlane.xlu0 %79
    %vm81 = vcmask 253952
    %v82 = vsel %vm81, %v52, 0.0
    %83 = vadd.xlane.f32.xlu0 %v82
    %v84 = vpop.xlane.xlu0 %83
    %v85 = vsel %vm74, %v53, 0.0
    %86 = vadd.xlane.f32.xlu0 %v85
    %v87 = vpop.xlane.xlu0 %86
    %v88 = vsel %vm74, %v54, 0.0
    %89 = vadd.xlane.f32.xlu0 %v88
    %v90 = vpop.xlane.xlu0 %89
    %v91 = vsel %vm81, %v55, 0.0
    %92 = vadd.xlane.f32.xlu0 %v91
    %v93 = vpop.xlane.xlu0 %92
    %v94 = vsel %vm74, %v56, 0.0
    %95 = vadd.xlane.f32.xlu0 %v94
    %v96 = vpop.xlane.xlu0 %95
    %v97 = vsel %vm74, %v57, 0.0
    %98 = vadd.xlane.f32.xlu0 %v97
    %v99 = vpop.xlane.xlu0 %98
    %v100 = vsel %vm81, %v58, 0.0
    %101 = vadd.xlane.f32.xlu0 %v100
    %v102 = vpop.xlane.xlu0 %101
    %v103 = vsel %vm74, %v59, 0.0
    %104 = vadd.xlane.f32.xlu0 %v103
    %v105 = vpop.xlane.xlu0 %104
    %v106 = vsel %vm74, %v60, 0.0
    %107 = vadd.xlane.f32.xlu0 %v106
    %v108 = vpop.xlane.xlu0 %107
    %v109 = vsel %vm81, %v61, 0.0
    %110 = vadd.xlane.f32.xlu0 %v109
    %v111 = vpop.xlane.xlu0 %110
    %v112 = vsel %vm74, %v62, 0.0
    %113 = vadd.xlane.f32.xlu0 %v112
    %v114 = vpop.xlane.xlu0 %113
    %v115 = vsel %vm74, %v63, 0.0
    %116 = vadd.xlane.f32.xlu0 %v115
    %v117 = vpop.xlane.xlu0 %116
    %v118 = vsel %vm81, %v64, 0.0
    %119 = vadd.xlane.f32.xlu0 %v118
    %v120 = vpop.xlane.xlu0 %119
    %v121 = vsel %vm74, %v65, 0.0
    %122 = vadd.xlane.f32.xlu0 %v121
    %v123 = vpop.xlane.xlu0 %122
    %v124 = vsel %vm74, %v66, 0.0
    %125 = vadd.xlane.f32.xlu0 %v124
    %v126 = vpop.xlane.xlu0 %125
    %v127 = vsel %vm81, %v67, 0.0
    %128 = vadd.xlane.f32.xlu0 %v127
    %v129 = vpop.xlane.xlu0 %128
    %v130 = vsel %vm74, %v68, 0.0
    %131 = vadd.xlane.f32.xlu0 %v130
    %v132 = vpop.xlane.xlu0 %131
    %v133 = vsel %vm74, %v69, 0.0
    %134 = vadd.xlane.f32.xlu0 %v133
    %v135 = vpop.xlane.xlu0 %134
    %v136 = vsel %vm81, %v70, 0.0
    %137 = vadd.xlane.f32.xlu0 %v136
    %v138 = vpop.xlane.xlu0 %137
    %v139 = vsel %vm74, %v71, 0.0
    %140 = vadd.xlane.f32.xlu0 %v139
    %v141 = vpop.xlane.xlu0 %140
    %v142 = vsel %vm74, %v72, 0.0
    %143 = vadd.xlane.f32.xlu0 %v142
    %v144 = vpop.xlane.xlu0 %143
    %v145 = vsel %vm81, %v73, 0.0
    %146 = vadd.xlane.f32.xlu0 %v145
    %v147 = vpop.xlane.xlu0 %146
    %v148 = vstv %s46
    %v149 = vadd.f32 %v77, %v148
    %v150 = vadd.f32 %v80, %v148
    %v151 = vadd.f32 %v84, %v148
    %v152 = vadd.f32 %v87, %v148
    %v153 = vadd.f32 %v90, %v148
    %v154 = vadd.f32 %v93, %v148
    %v155 = vadd.f32 %v96, %v148
    %v156 = vadd.f32 %v99, %v148
    %v157 = vadd.f32 %v102, %v148
    %v158 = vadd.f32 %v105, %v148
    %v159 = vadd.f32 %v108, %v148
    %v160 = vadd.f32 %v111, %v148
    %v161 = vadd.f32 %v114, %v148
    %v162 = vadd.f32 %v117, %v148
    %v163 = vadd.f32 %v120, %v148
    %v164 = vadd.f32 %v123, %v148
    %v165 = vadd.f32 %v126, %v148
    %v166 = vadd.f32 %v129, %v148
    %v167 = vadd.f32 %v132, %v148
    %v168 = vadd.f32 %v135, %v148
    %v169 = vadd.f32 %v138, %v148
    %v170 = vadd.f32 %v141, %v148
    %v171 = vadd.f32 %v144, %v148
    %v172 = vadd.f32 %v147, %v148
    %v197 = vlaneseq
    %v198 = vand.u32 %v197, 127
    %v199 = vperm.slane %v149, %v198
    %v200 = vadd.s32 %v198, 4294967288
    %v201 = vperm.slane %v150, %v200
    %vm202 = vcmask 130112
    %v203 = vsel %vm202, %v201, %v199
    %v204 = vadd.s32 %v198, 4294967280
    %v205 = vperm.slane %v151, %v204
    %vm206 = vcmask 195712
    %v207 = vsel %vm206, %v205, %v203
    %v208 = vperm.slane %v152, %v198
    %v209 = vperm.slane %v153, %v200
    %v210 = vsel %vm202, %v209, %v208
    %v211 = vperm.slane %v154, %v204
    %v212 = vsel %vm206, %v211, %v210
    %v213 = vperm.slane %v155, %v198
    %v214 = vperm.slane %v156, %v200
    %v215 = vsel %vm202, %v214, %v213
    %v216 = vperm.slane %v157, %v204
    %v217 = vsel %vm206, %v216, %v215
    %v218 = vperm.slane %v158, %v198
    %v219 = vperm.slane %v159, %v200
    %v220 = vsel %vm202, %v219, %v218
    %v221 = vperm.slane %v160, %v204
    %v222 = vsel %vm206, %v221, %v220
    %v223 = vperm.slane %v161, %v198
    %v224 = vperm.slane %v162, %v200
    %v225 = vsel %vm202, %v224, %v223
    %v226 = vperm.slane %v163, %v204
    %v227 = vsel %vm206, %v226, %v225
    %v228 = vperm.slane %v164, %v198
    %v229 = vperm.slane %v165, %v200
    %v230 = vsel %vm202, %v229, %v228
    %v231 = vperm.slane %v166, %v204
    %v232 = vsel %vm206, %v231, %v230
    %v233 = vperm.slane %v167, %v198
    %v234 = vperm.slane %v168, %v200
    %v235 = vsel %vm202, %v234, %v233
    %v236 = vperm.slane %v169, %v204
    %v237 = vsel %vm206, %v236, %v235
    %v238 = vperm.slane %v170, %v198
    %v239 = vperm.slane %v171, %v200
    %v240 = vsel %vm202, %v239, %v238
    %v241 = vperm.slane %v172, %v204
    %v242 = vsel %vm206, %v241, %v240
    %vm243 = vcmask 1041409
    %v244 = vsel %vm243, %v212, %v207
    %vm245 = vcmask 1042434
    %v246 = vsel %vm245, %v217, %v244
    %vm247 = vcmask 1043459
    %v248 = vsel %vm247, %v222, %v246
    %vm249 = vcmask 1044484
    %v250 = vsel %vm249, %v227, %v248
    %vm251 = vcmask 1045509
    %v252 = vsel %vm251, %v232, %v250
    %vm253 = vcmask 1046534
    %v254 = vsel %vm253, %v237, %v252
    %vm255 = vcmask 1047559
    %v256 = vsel %vm255, %v242, %v254
    %vm258 = vcmask 138240
    %259 = vst.msk [vmem:[#allocation3] sm:$0xff] %vm258, %v256
    %v260 = vld [vmem:[%s1] sm:$0xff]
    %v261 = vld [vmem:[%s1 + $0x8] sm:$0xff]
    %v262 = vld [vmem:[%s1 + $0x10] sm:$0x1]
    %v263 = vmul.f32 %v149, %v149
    %v264 = vmul.f32 %v150, %v150
    %v265 = vmul.f32 %v151, %v151
    %v266 = vmul.f32 %v152, %v152
    %v267 = vmul.f32 %v153, %v153
    %v268 = vmul.f32 %v154, %v154
    %v269 = vmul.f32 %v155, %v155
    %v270 = vmul.f32 %v156, %v156
    %v271 = vmul.f32 %v157, %v157
    %v272 = vmul.f32 %v158, %v158
    %v273 = vmul.f32 %v159, %v159
    %v274 = vmul.f32 %v160, %v160
    %v275 = vmul.f32 %v161, %v161
    %v276 = vmul.f32 %v162, %v162
    %v277 = vmul.f32 %v163, %v163
    %v278 = vmul.f32 %v164, %v164
    %v279 = vmul.f32 %v165, %v165
    %v280 = vmul.f32 %v166, %v166
    %v281 = vmul.f32 %v167, %v167
    %v282 = vmul.f32 %v168, %v168
    %v283 = vmul.f32 %v169, %v169
    %v284 = vmul.f32 %v170, %v170
    %v285 = vmul.f32 %v171, %v171
    %v286 = vmul.f32 %v172, %v172
    %vm287 = vcmp.le.f32.partialorder %v260, %v263
    %vm288 = vcmp.le.f32.partialorder %v261, %v264
    %vm289 = vcmp.le.f32.partialorder %v262, %v265
    %vm290 = vcmp.le.f32.partialorder %v260, %v266
    %vm291 = vcmp.le.f32.partialorder %v261, %v267
    %vm292 = vcmp.le.f32.partialorder %v262, %v268
    %vm293 = vcmp.le.f32.partialorder %v260, %v269
    %vm294 = vcmp.le.f32.partialorder %v261, %v270
    %vm295 = vcmp.le.f32.partialorder %v262, %v271
    %vm296 = vcmp.le.f32.partialorder %v260, %v272
    %vm297 = vcmp.le.f32.partialorder %v261, %v273
    %vm298 = vcmp.le.f32.partialorder %v262, %v274
    %vm299 = vcmp.le.f32.partialorder %v260, %v275
    %vm300 = vcmp.le.f32.partialorder %v261, %v276
    %vm301 = vcmp.le.f32.partialorder %v262, %v277
    %vm302 = vcmp.le.f32.partialorder %v260, %v278
    %vm303 = vcmp.le.f32.partialorder %v261, %v279
    %vm304 = vcmp.le.f32.partialorder %v262, %v280
    %vm305 = vcmp.le.f32.partialorder %v260, %v281
    %vm306 = vcmp.le.f32.partialorder %v261, %v282
    %vm307 = vcmp.le.f32.partialorder %v262, %v283
    %vm308 = vcmp.le.f32.partialorder %v260, %v284
    %vm309 = vcmp.le.f32.partialorder %v261, %v285
    %vm310 = vcmp.le.f32.partialorder %v262, %v286
    %v311 = vsel %vm287, 1.0, 0.0
    %v312 = vsel %vm288, 1.0, 0.0
    %v313 = vsel %vm289, 1.0, 0.0
    %v314 = vsel %vm290, 1.0, 0.0
    %v315 = vsel %vm291, 1.0, 0.0
    %v316 = vsel %vm292, 1.0, 0.0
    %v317 = vsel %vm293, 1.0, 0.0
    %v318 = vsel %vm294, 1.0, 0.0
    %v319 = vsel %vm295, 1.0, 0.0
    %v320 = vsel %vm296, 1.0, 0.0
    %v321 = vsel %vm297, 1.0, 0.0
    %v322 = vsel %vm298, 1.0, 0.0
    %v323 = vsel %vm299, 1.0, 0.0
    %v324 = vsel %vm300, 1.0, 0.0
    %v325 = vsel %vm301, 1.0, 0.0
    %v326 = vsel %vm302, 1.0, 0.0
    %v327 = vsel %vm303, 1.0, 0.0
    %v328 = vsel %vm304, 1.0, 0.0
    %v329 = vsel %vm305, 1.0, 0.0
    %v330 = vsel %vm306, 1.0, 0.0
    %v331 = vsel %vm307, 1.0, 0.0
    %v332 = vsel %vm308, 1.0, 0.0
    %v333 = vsel %vm309, 1.0, 0.0
    %v334 = vsel %vm310, 1.0, 0.0
    %v335 = vpack.c.bf16 %v311, %v311
    %v336 = vpack.c.bf16 %v312, %v312
    %v337 = vpack.c.bf16 %v313, %v313
    %v338 = vpack.c.bf16 %v314, %v314
    %v339 = vpack.c.bf16 %v315, %v315
    %v340 = vpack.c.bf16 %v316, %v316
    %v341 = vpack.c.bf16 %v317, %v317
    %v342 = vpack.c.bf16 %v318, %v318
    %v343 = vpack.c.bf16 %v319, %v319
    %v344 = vpack.c.bf16 %v320, %v320
    %v345 = vpack.c.bf16 %v321, %v321
    %v346 = vpack.c.bf16 %v322, %v322
    %v347 = vpack.c.bf16 %v323, %v323
    %v348 = vpack.c.bf16 %v324, %v324
    %v349 = vpack.c.bf16 %v325, %v325
    %v350 = vpack.c.bf16 %v326, %v326
    %v351 = vpack.c.bf16 %v327, %v327
    %v352 = vpack.c.bf16 %v328, %v328
    %v353 = vpack.c.bf16 %v329, %v329
    %v354 = vpack.c.bf16 %v330, %v330
    %v355 = vpack.c.bf16 %v331, %v331
    %v356 = vpack.c.bf16 %v332, %v332
    %v357 = vpack.c.bf16 %v333, %v333
    %v358 = vpack.c.bf16 %v334, %v334
    %vm359 = vcmask 134144
    %360 = vst.msk [vmem:[%s4] sm:$0xf] %vm359, %v335
    %361 = vst.msk [vmem:[%s4 + $0x4] sm:$0xf] %vm359, %v336
    %vm362 = vcmask 131072
    %vm363 = vsmask.f32 256
    %vm364 = vmand %vm362, %vm363
    %v365 = vld [vmem:[%s4 + $0x8] sm:$0x1]
    %v366 = vsel %vm364, %v337, %v365
    %367 = vst [vmem:[%s4 + $0x8] sm:$0x1] %v366
    %368 = vst.msk [vmem:[%s4 + $0xc] sm:$0xf] %vm359, %v338
    %369 = vst.msk [vmem:[%s4 + $0x10] sm:$0xf] %vm359, %v339
    %v370 = vld [vmem:[%s4 + $0x14] sm:$0x1]
    %v371 = vsel %vm364, %v340, %v370
    %372 = vst [vmem:[%s4 + $0x14] sm:$0x1] %v371
    %373 = vst.msk [vmem:[%s4 + $0x18] sm:$0xf] %vm359, %v341
    %374 = vst.msk [vmem:[%s4 + $0x1c] sm:$0xf] %vm359, %v342
    %v375 = vld [vmem:[%s4 + $0x20] sm:$0x1]
    %v376 = vsel %vm364, %v343, %v375
    %377 = vst [vmem:[%s4 + $0x20] sm:$0x1] %v376
    %378 = vst.msk [vmem:[%s4 + $0x24] sm:$0xf] %vm359, %v344
    %379 = vst.msk [vmem:[%s4 + $0x28] sm:$0xf] %vm359, %v345
    %v380 = vld [vmem:[%s4 + $0x2c] sm:$0x1]
    %v381 = vsel %vm364, %v346, %v380
    %382 = vst [vmem:[%s4 + $0x2c] sm:$0x1] %v381
    %383 = vst.msk [vmem:[%s4 + $0x30] sm:$0xf] %vm359, %v347
    %384 = vst.msk [vmem:[%s4 + $0x34] sm:$0xf] %vm359, %v348
    %v385 = vld [vmem:[%s4 + $0x38] sm:$0x1]
    %v386 = vsel %vm364, %v349, %v385
    %387 = vst [vmem:[%s4 + $0x38] sm:$0x1] %v386
    %388 = vst.msk [vmem:[%s4 + $0x3c] sm:$0xf] %vm359, %v350
    %389 = vst.msk [vmem:[%s4 + $0x40] sm:$0xf] %vm359, %v351
    %v390 = vld [vmem:[%s4 + $0x44] sm:$0x1]
    %v391 = vsel %vm364, %v352, %v390
    %392 = vst [vmem:[%s4 + $0x44] sm:$0x1] %v391
    %393 = vst.msk [vmem:[%s4 + $0x48] sm:$0xf] %vm359, %v353
    %394 = vst.msk [vmem:[%s4 + $0x4c] sm:$0xf] %vm359, %v354
    %v395 = vld [vmem:[%s4 + $0x50] sm:$0x1]
    %v396 = vsel %vm364, %v355, %v395
    %397 = vst [vmem:[%s4 + $0x50] sm:$0x1] %v396
    %398 = vst.msk [vmem:[%s4 + $0x54] sm:$0xf] %vm359, %v356
    %399 = vst.msk [vmem:[%s4 + $0x58] sm:$0xf] %vm359, %v357
    %v400 = vld [vmem:[%s4 + $0x5c] sm:$0x1]
    %v401 = vsel %vm364, %v358, %v400
    %402 = vst [vmem:[%s4 + $0x5c] sm:$0x1] %v401
    // Predicated region
    $region18: #{tpu_custom_call.1} parent=1 // pred_check
      _
    $region19: #{tpu_custom_call.1} parent=1 // pred_check_branch
      %404 = sbr.rel (0) target = $region21
    $region20: #{tpu_custom_call.1} parent=1 // pred_region
      _
    $region21: #{tpu_custom_call.1} parent=1 // pred_fallthru
      _
    // Predicated region
    $region22: #{tpu_custom_call.1} parent=1 // pred_check
      _
    $region23: #{tpu_custom_call.1} parent=1 // pred_check_branch
      %406 = sbr.rel (0) target = $region25
    $region24: #{tpu_custom_call.1} parent=1 // pred_region
      %408 = vsyncadd [#allocation4], 0
      %s410 = sshll.u32 [#allocation3], 4
      %s411 = int_to_ptr.vmem [resolvable:$true] %s410
      %s412 = sshll.u32 %s5, 4
      %s413 = int_to_ptr.hbm [resolvable:$true] %s412
      %415 = dma.vmem_to_hbm [thread:$0]  %s411, 128, %s413, [#allocation4]
    $region25: #{tpu_custom_call.1} parent=1 // pred_fallthru
      _
    // Predicated region
    $region26: #{tpu_custom_call.1} parent=1 // pred_check
      _
    $region27: #{tpu_custom_call.1} parent=1 // pred_check_branch
      %417 = sbr.rel (0) target = $region29
    $region28: #{tpu_custom_call.1} parent=1 // pred_region
      _
    $region29: #{tpu_custom_call.1} parent=1 // pred_fallthru
      _
    // Predicated region
    $region30: #{tpu_custom_call.1} parent=1 // pred_check
      _
    $region31: #{tpu_custom_call.1} parent=1 // pred_check_branch
      %419 = sbr.rel (0) target = $region33
    $region32: #{tpu_custom_call.1} parent=1 // pred_region
      %421 = dma.done [#allocation4], 128
    $region33: #{tpu_custom_call.1} parent=1 // pred_fallthru
      _
    %422 = vsyncpa [#allocation4], 1

</llo_original>
